<compile_context>
chip_gen: v7x
topology: tpu7x:2x2x1
jax: 0.10.0
libtpu: 0.0.40
codegen_flags: <defaults>
</compile_context>

<pallas_src>
import functools

import jax
import jax.numpy as jnp
from jax.experimental import pallas as pl
from jax.experimental.pallas import tpu as pltpu


LN_EPS = 1e-12  # transformers BertSelfOutput default


def _bert_adapted_self_output_kernel(
    x_ref,         # (tm, H)  hidden_states tile, bf16 (matmul operand)
    inp_ref,       # (tm, H)  input_tensor tile (residual), original dtype
    dense_wt_ref,  # (H, H)   dense weight, pre-transposed, bf16
    dense_b_ref,   # (1, H)   f32
    down_wt_ref,   # (H, Ap)  adapter down-project weight, transposed+padded, bf16
    down_b_ref,    # (1, Ap)  f32 (zero-padded)
    up_wt_ref,     # (Ap, H)  adapter up-project weight, transposed+padded, bf16
    up_b_ref,      # (1, H)   f32
    gamma_ref,     # (1, H)   LayerNorm weight, f32
    beta_ref,      # (1, H)   LayerNorm bias, f32
    o_ref,         # (tm, H)
):
    # --- self_output.dense : bf16 x bf16 -> f32 accumulate on the MXU ---
    h = jnp.dot(x_ref[...], dense_wt_ref[...],
                preferred_element_type=jnp.float32) + dense_b_ref[...]

    # --- self_output.dropout ---
    # TODO(synk): dropout is identity here (inference; p only applies in training).

    # --- adapter: down-project -> ReLU -> up-project -> residual ---
    # Padded adapter lanes carry zero weights/bias, so they contribute nothing.
    d = jnp.dot(h.astype(jnp.bfloat16), down_wt_ref[...],
                preferred_element_type=jnp.float32) + down_b_ref[...]
    a = jnp.maximum(d, 0.0)
    up = jnp.dot(a.astype(jnp.bfloat16), up_wt_ref[...],
                 preferred_element_type=jnp.float32) + up_b_ref[...]
    h = h + up

    # --- LayerNorm(h + input_tensor), fused single-pass moments, f32 ---
    y = h + inp_ref[...].astype(jnp.float32)
    inv_h = 1.0 / float(y.shape[-1])
    s1 = jnp.sum(y, axis=-1, keepdims=True)
    s2 = jnp.sum(y * y, axis=-1, keepdims=True)
    mean = s1 * inv_h
    var = jnp.maximum(s2 * inv_h - mean * mean, 0.0)
    yn = (y - mean) * jax.lax.rsqrt(var + LN_EPS)
    out = yn * gamma_ref[...] + beta_ref[...]

    o_ref[...] = out.astype(o_ref.dtype)


def prepare_params(params, *, lane_pad=128):
    """One-time weight prep (transpose, pad adapter width, cast to bf16).

    Call this ONCE outside the jitted forward so no transpose/pad/cast is
    re-materialized in HBM on every call.
    """
    H = params["dense_w"].shape[0]
    A = params["down_w"].shape[0]
    A_pad = ((A + lane_pad - 1) // lane_pad) * lane_pad

    dense_wt = params["dense_w"].T.astype(jnp.bfloat16)              # (H, H)
    down_wt = jnp.zeros((H, A_pad), jnp.bfloat16)
    down_wt = down_wt.at[:, :A].set(params["down_w"].T.astype(jnp.bfloat16))
    up_wt = jnp.zeros((A_pad, H), jnp.bfloat16)
    up_wt = up_wt.at[:A, :].set(params["up_w"].T.astype(jnp.bfloat16))

    down_b = jnp.zeros((1, A_pad), jnp.float32)
    down_b = down_b.at[:, :A].set(params["down_b"].astype(jnp.float32))

    return {
        "dense_wt": dense_wt,
        "dense_b": params["dense_b"].reshape(1, H).astype(jnp.float32),
        "down_wt": down_wt,
        "down_b": down_b,
        "up_wt": up_wt,
        "up_b": params["up_b"].reshape(1, H).astype(jnp.float32),
        "ln_gamma": params["ln_gamma"].reshape(1, H).astype(jnp.float32),
        "ln_beta": params["ln_beta"].reshape(1, H).astype(jnp.float32),
    }


@functools.partial(jax.jit, static_argnames=("tm",))
def bert_adapted_self_output(hidden_states, input_tensor, prepared, *, tm=None):
    """hidden_states / input_tensor: (B, S, H). Returns (B, S, H)."""
    B, S, H = hidden_states.shape
    M = B * S
    A_pad = prepared["down_b"].shape[1]
    out_dtype = hidden_states.dtype

    if tm is None:
        tm = min(256, M)
        if M >= 8:
            tm = max(8, (tm // 8) * 8)   # keep sublane-aligned tiles

    # Activations: bf16 for the matmul operand, residual kept at input precision.
    x2 = hidden_states.reshape(M, H).astype(jnp.bfloat16)
    inp2 = input_tensor.reshape(M, H)

    grid = (pl.cdiv(M, tm),)
    # NOTE: if M % tm != 0 the last tile is padded; LN is per-row over H so
    # padded rows never contaminate valid rows and are dropped on writeback.
    row_bf16 = pl.BlockSpec((tm, H), lambda i: (i, 0))
    row_inp = pl.BlockSpec((tm, H), lambda i: (i, 0))
    full = lambda shape: pl.BlockSpec(shape, lambda i: (0, 0))
    # TODO(synk): single-buffer the constant weight specs
    # (pipeline_mode=pl.Buffered(1)) once validated on the target jax version;
    # their index_map is constant so they are only DMA'd once either way.

    # Explicit scoped-VMEM budget: weights (double-buffered) + activation
    # tiles (double-buffered) + f32 compute headroom, clamped for v7x (64 MiB).
    itemsize_in = jnp.dtype(inp2.dtype).itemsize
    weight_bytes = (H * H + 2 * H * A_pad) * 2
    act_bytes = 2 * tm * H * (2 + itemsize_in + jnp.dtype(out_dtype).itemsize)
    vmem_limit = int(min(max(2 * weight_bytes + act_bytes + (16 << 20),
                             32 << 20), 64 << 20))

    out2 = pl.pallas_call(
        _bert_adapted_self_output_kernel,
        out_shape=jax.ShapeDtypeStruct((M, H), out_dtype),
        grid_spec=pltpu.PrefetchScalarGridSpec(
            num_scalar_prefetch=0,
            grid=grid,
            in_specs=[
                row_bf16,                 # hidden_states tile (bf16)
                row_inp,                  # input_tensor tile (residual)
                full((H, H)),             # dense_w^T (bf16)
                full((1, H)),             # dense_b (f32)
                full((H, A_pad)),         # down_w^T padded (bf16)
                full((1, A_pad)),         # down_b padded (f32)
                full((A_pad, H)),         # up_w^T padded (bf16)
                full((1, H)),             # up_b (f32)
                full((1, H)),             # ln_gamma (f32)
                full((1, H)),             # ln_beta (f32)
            ],
            out_specs=pl.BlockSpec((tm, H), lambda i: (i, 0)),
        ),
        compiler_params=pltpu.CompilerParams(
            dimension_semantics=("parallel",),
            vmem_limit_bytes=vmem_limit),
    )(x2, inp2,
      prepared["dense_wt"], prepared["dense_b"],
      prepared["down_wt"], prepared["down_b"],
      prepared["up_wt"], prepared["up_b"],
      prepared["ln_gamma"], prepared["ln_beta"])

    return out2.reshape(B, S, H)


def init_params(key, hidden_size, adapter_size, initializer_range=0.02):
    k1, k2, k3 = jax.random.split(key, 3)
    return {
        # BertSelfOutput.dense: Linear(hidden, hidden)
        "dense_w": jax.random.normal(k1, (hidden_size, hidden_size), jnp.float32) * 0.02,
        "dense_b": jnp.zeros((hidden_size,), jnp.float32),
        # Adapter_func params (normal init, std = adapter_initializer_range)
        "down_w": jax.random.normal(k2, (adapter_size, hidden_size), jnp.float32) * initializer_range,
        "down_b": jnp.zeros((adapter_size,), jnp.float32),
        "up_w": jax.random.normal(k3, (hidden_size, adapter_size), jnp.float32) * initializer_range,
        "up_b": jnp.zeros((hidden_size,), jnp.float32),
        # LayerNorm
        "ln_gamma": jnp.ones((hidden_size,), jnp.float32),
        "ln_beta": jnp.zeros((hidden_size,), jnp.float32),
    }


def _reference(hidden_states, input_tensor, params):
    """Pure-JAX f32 reference of the same forward (sanity check)."""
    h = hidden_states @ params["dense_w"].T + params["dense_b"]
    d = jnp.maximum(h @ params["down_w"].T + params["down_b"], 0.0)
    h = h + (d @ params["up_w"].T + params["up_b"])
    y = h + input_tensor
    mean = jnp.mean(y, -1, keepdims=True)
    var = jnp.mean((y - mean) ** 2, -1, keepdims=True)
    yn = (y - mean) * jax.lax.rsqrt(var + LN_EPS)
    return yn * params["ln_gamma"] + params["ln_beta"]


if __name__ == "__main__":
    B, S, H, A = 2, 8, 32, 16
    key = jax.random.PRNGKey(0)
    kx, ki, kp = jax.random.split(key, 3)

    hidden_states = jax.random.normal(kx, (B, S, H), jnp.float32)
    input_tensor = jax.random.normal(ki, (B, S, H), jnp.float32)
    params = init_params(kp, H, A, initializer_range=0.02)

    # One-time weight prep (transpose + pad adapter width to 128 + bf16 cast).
    prepared = prepare_params(params)

    # tm=8 -> 2 grid steps over M=16, exercising the pipelined/tiled path.
    out = bert_adapted_self_output(hidden_states, input_tensor, prepared, tm=8)
    out = jax.block_until_ready(out)

    ref = _reference(hidden_states, input_tensor, params)
    assert out.shape == (B, S, H)
    # bf16 matmul operands (f32 accumulate) => loosened tolerance vs f32 reference.
    assert jnp.allclose(out, ref, atol=2e-2, rtol=2e-2), "mismatch vs reference"

    print("KERNEL_OK")
</pallas_src>

<mosaic_0001>
module attributes {stable_mosaic.version = 11 : i64} {
  func.func @_bert_adapted_self_output_kernel(%arg0: i32, %arg1: memref<8x32xbf16, #tpu.memory_space<vmem>>, %arg2: memref<8x32xf32, #tpu.memory_space<vmem>>, %arg3: memref<32x32xbf16, #tpu.memory_space<vmem>>, %arg4: memref<1x32xf32, #tpu.memory_space<vmem>>, %arg5: memref<32x128xbf16, #tpu.memory_space<vmem>>, %arg6: memref<1x128xf32, #tpu.memory_space<vmem>>, %arg7: memref<128x32xbf16, #tpu.memory_space<vmem>>, %arg8: memref<1x32xf32, #tpu.memory_space<vmem>>, %arg9: memref<1x32xf32, #tpu.memory_space<vmem>>, %arg10: memref<1x32xf32, #tpu.memory_space<vmem>>, %arg11: memref<8x32xf32, #tpu.memory_space<vmem>>) attributes {dimension_semantics = [#tpu.dimension_semantics<parallel>], iteration_bounds = array<i64: 2>, scalar_prefetch = 0 : i64, scratch_operands = 0 : i64, tpu.core_type = #tpu.core_type<tc>, window_params = [{transform_indices = @transform_0, window_bounds = array<i64: 8, 32>}, {transform_indices = @transform_1, window_bounds = array<i64: 8, 32>}, {pipeline_mode = #tpu.pipeline_mode<synchronous>, transform_indices = @transform_2, window_bounds = array<i64: 32, 32>}, {pipeline_mode = #tpu.pipeline_mode<synchronous>, transform_indices = @transform_3, window_bounds = array<i64: 1, 32>}, {pipeline_mode = #tpu.pipeline_mode<synchronous>, transform_indices = @transform_4, window_bounds = array<i64: 32, 128>}, {pipeline_mode = #tpu.pipeline_mode<synchronous>, transform_indices = @transform_5, window_bounds = array<i64: 1, 128>}, {pipeline_mode = #tpu.pipeline_mode<synchronous>, transform_indices = @transform_6, window_bounds = array<i64: 128, 32>}, {pipeline_mode = #tpu.pipeline_mode<synchronous>, transform_indices = @transform_7, window_bounds = array<i64: 1, 32>}, {pipeline_mode = #tpu.pipeline_mode<synchronous>, transform_indices = @transform_8, window_bounds = array<i64: 1, 32>}, {pipeline_mode = #tpu.pipeline_mode<synchronous>, transform_indices = @transform_9, window_bounds = array<i64: 1, 32>}, {transform_indices = @transform_10, window_bounds = array<i64: 8, 32>}]} {
    %c0 = arith.constant 0 : index
    %c0_0 = arith.constant 0 : index
    %0 = vector.load %arg1[%c0, %c0_0] : memref<8x32xbf16, #tpu.memory_space<vmem>>, vector<8x32xbf16>
    %c0_1 = arith.constant 0 : index
    %c0_2 = arith.constant 0 : index
    %1 = vector.load %arg3[%c0_1, %c0_2] : memref<32x32xbf16, #tpu.memory_space<vmem>>, vector<32x32xbf16>
    %cst = arith.constant dense<0.000000e+00> : vector<8x32xf32>
    %2 = tpu.matmul %0, %1, %cst {dimension_numbers = #tpu.dot_dimension_numbers<[1], [0], [0], [1], [0, 0, 1, 1], [], []>} : vector<8x32xbf16>, vector<32x32xbf16>, vector<8x32xf32> -> vector<8x32xf32>
    %c0_3 = arith.constant 0 : index
    %c0_4 = arith.constant 0 : index
    %3 = vector.load %arg4[%c0_3, %c0_4] : memref<1x32xf32, #tpu.memory_space<vmem>>, vector<1x32xf32>
    %4 = vector.broadcast %3 : vector<1x32xf32> to vector<8x32xf32>
    %5 = arith.addf %2, %4 : vector<8x32xf32>
    %6 = arith.truncf %5 : vector<8x32xf32> to vector<8x32xbf16>
    %c0_5 = arith.constant 0 : index
    %c0_6 = arith.constant 0 : index
    %7 = vector.load %arg5[%c0_5, %c0_6] : memref<32x128xbf16, #tpu.memory_space<vmem>>, vector<32x128xbf16>
    %cst_7 = arith.constant dense<0.000000e+00> : vector<8x128xf32>
    %8 = tpu.matmul %6, %7, %cst_7 {dimension_numbers = #tpu.dot_dimension_numbers<[1], [0], [0], [1], [0, 0, 1, 1], [], []>} : vector<8x32xbf16>, vector<32x128xbf16>, vector<8x128xf32> -> vector<8x128xf32>
    %c0_8 = arith.constant 0 : index
    %c0_9 = arith.constant 0 : index
    %9 = vector.load %arg6[%c0_8, %c0_9] : memref<1x128xf32, #tpu.memory_space<vmem>>, vector<1x128xf32>
    %10 = vector.broadcast %9 : vector<1x128xf32> to vector<8x128xf32>
    %11 = arith.addf %8, %10 : vector<8x128xf32>
    %cst_10 = arith.constant 0.000000e+00 : f32
    %12 = vector.broadcast %cst_10 : f32 to vector<8x128xf32>
    %13 = arith.maximumf %11, %12 : vector<8x128xf32>
    %14 = arith.truncf %13 : vector<8x128xf32> to vector<8x128xbf16>
    %c0_11 = arith.constant 0 : index
    %c0_12 = arith.constant 0 : index
    %15 = vector.load %arg7[%c0_11, %c0_12] : memref<128x32xbf16, #tpu.memory_space<vmem>>, vector<128x32xbf16>
    %cst_13 = arith.constant dense<0.000000e+00> : vector<8x32xf32>
    %16 = tpu.matmul %14, %15, %cst_13 {dimension_numbers = #tpu.dot_dimension_numbers<[1], [0], [0], [1], [0, 0, 1, 1], [], []>} : vector<8x128xbf16>, vector<128x32xbf16>, vector<8x32xf32> -> vector<8x32xf32>
    %c0_14 = arith.constant 0 : index
    %c0_15 = arith.constant 0 : index
    %17 = vector.load %arg8[%c0_14, %c0_15] : memref<1x32xf32, #tpu.memory_space<vmem>>, vector<1x32xf32>
    %18 = vector.broadcast %17 : vector<1x32xf32> to vector<8x32xf32>
    %19 = arith.addf %16, %18 : vector<8x32xf32>
    %20 = arith.addf %5, %19 : vector<8x32xf32>
    %c0_16 = arith.constant 0 : index
    %c0_17 = arith.constant 0 : index
    %21 = vector.load %arg2[%c0_16, %c0_17] : memref<8x32xf32, #tpu.memory_space<vmem>>, vector<8x32xf32>
    %22 = arith.addf %20, %21 : vector<8x32xf32>
    %cst_18 = arith.constant dense<0.000000e+00> : vector<8xf32>
    %23 = vector.multi_reduction <add>, %22, %cst_18 [1] : vector<8x32xf32> to vector<8xf32>
    %24 = vector.shape_cast %23 : vector<8xf32> to vector<8x1xf32>
    %25 = arith.mulf %22, %22 : vector<8x32xf32>
    %cst_19 = arith.constant dense<0.000000e+00> : vector<8xf32>
    %26 = vector.multi_reduction <add>, %25, %cst_19 [1] : vector<8x32xf32> to vector<8xf32>
    %27 = vector.shape_cast %26 : vector<8xf32> to vector<8x1xf32>
    %cst_20 = arith.constant 3.125000e-02 : f32
    %28 = vector.broadcast %cst_20 : f32 to vector<8x1xf32>
    %29 = arith.mulf %24, %28 : vector<8x1xf32>
    %cst_21 = arith.constant 3.125000e-02 : f32
    %30 = vector.broadcast %cst_21 : f32 to vector<8x1xf32>
    %31 = arith.mulf %27, %30 : vector<8x1xf32>
    %32 = arith.mulf %29, %29 : vector<8x1xf32>
    %33 = arith.subf %31, %32 : vector<8x1xf32>
    %cst_22 = arith.constant 0.000000e+00 : f32
    %34 = vector.broadcast %cst_22 : f32 to vector<8x1xf32>
    %35 = arith.maximumf %33, %34 : vector<8x1xf32>
    %36 = vector.broadcast %29 : vector<8x1xf32> to vector<8x32xf32>
    %37 = arith.subf %22, %36 : vector<8x32xf32>
    %cst_23 = arith.constant 9.99999996E-13 : f32
    %38 = vector.broadcast %cst_23 : f32 to vector<8x1xf32>
    %39 = arith.addf %35, %38 : vector<8x1xf32>
    %40 = math.rsqrt %39 : vector<8x1xf32>
    %41 = vector.broadcast %40 : vector<8x1xf32> to vector<8x32xf32>
    %42 = arith.mulf %37, %41 : vector<8x32xf32>
    %c0_24 = arith.constant 0 : index
    %c0_25 = arith.constant 0 : index
    %43 = vector.load %arg9[%c0_24, %c0_25] : memref<1x32xf32, #tpu.memory_space<vmem>>, vector<1x32xf32>
    %44 = vector.broadcast %43 : vector<1x32xf32> to vector<8x32xf32>
    %45 = arith.mulf %42, %44 : vector<8x32xf32>
    %c0_26 = arith.constant 0 : index
    %c0_27 = arith.constant 0 : index
    %46 = vector.load %arg10[%c0_26, %c0_27] : memref<1x32xf32, #tpu.memory_space<vmem>>, vector<1x32xf32>
    %47 = vector.broadcast %46 : vector<1x32xf32> to vector<8x32xf32>
    %48 = arith.addf %45, %47 : vector<8x32xf32>
    %c0_28 = arith.constant 0 : index
    %c0_29 = arith.constant 0 : index
    %49 = vector.load %arg11[%c0_28, %c0_29] : memref<8x32xf32, #tpu.memory_space<vmem>>, vector<8x32xf32>
    tpu.vector_store %arg11[%c0_28, %c0_29], %48 {strides = array<i32>} : memref<8x32xf32, #tpu.memory_space<vmem>>, vector<8x32xf32>,
    return
  }
  func.func @transform_0(%arg0: i32) -> (i32, i32) {
    %c0_i32 = arith.constant 0 : i32
    %c0_i32_0 = arith.constant 0 : i32
    return %arg0, %c0_i32 : i32, i32
  }
  func.func @transform_1(%arg0: i32) -> (i32, i32) {
    %c0_i32 = arith.constant 0 : i32
    %c0_i32_0 = arith.constant 0 : i32
    return %arg0, %c0_i32 : i32, i32
  }
  func.func @transform_2(%arg0: i32) -> (i32, i32) {
    %c0_i32 = arith.constant 0 : i32
    %c0_i32_0 = arith.constant 0 : i32
    %c0_i32_1 = arith.constant 0 : i32
    return %c0_i32, %c0_i32_0 : i32, i32
  }
  func.func @transform_3(%arg0: i32) -> (i32, i32) {
    %c0_i32 = arith.constant 0 : i32
    %c0_i32_0 = arith.constant 0 : i32
    %c0_i32_1 = arith.constant 0 : i32
    return %c0_i32, %c0_i32_0 : i32, i32
  }
  func.func @transform_4(%arg0: i32) -> (i32, i32) {
    %c0_i32 = arith.constant 0 : i32
    %c0_i32_0 = arith.constant 0 : i32
    %c0_i32_1 = arith.constant 0 : i32
    return %c0_i32, %c0_i32_0 : i32, i32
  }
  func.func @transform_5(%arg0: i32) -> (i32, i32) {
    %c0_i32 = arith.constant 0 : i32
    %c0_i32_0 = arith.constant 0 : i32
    %c0_i32_1 = arith.constant 0 : i32
    return %c0_i32, %c0_i32_0 : i32, i32
  }
  func.func @transform_6(%arg0: i32) -> (i32, i32) {
    %c0_i32 = arith.constant 0 : i32
    %c0_i32_0 = arith.constant 0 : i32
    %c0_i32_1 = arith.constant 0 : i32
    return %c0_i32, %c0_i32_0 : i32, i32
  }
  func.func @transform_7(%arg0: i32) -> (i32, i32) {
    %c0_i32 = arith.constant 0 : i32
    %c0_i32_0 = arith.constant 0 : i32
    %c0_i32_1 = arith.constant 0 : i32
    return %c0_i32, %c0_i32_0 : i32, i32
  }
  func.func @transform_8(%arg0: i32) -> (i32, i32) {
    %c0_i32 = arith.constant 0 : i32
    %c0_i32_0 = arith.constant 0 : i32
    %c0_i32_1 = arith.constant 0 : i32
    return %c0_i32, %c0_i32_0 : i32, i32
  }
  func.func @transform_9(%arg0: i32) -> (i32, i32) {
    %c0_i32 = arith.constant 0 : i32
    %c0_i32_0 = arith.constant 0 : i32
    %c0_i32_1 = arith.constant 0 : i32
    return %c0_i32, %c0_i32_0 : i32, i32
  }
  func.func @transform_10(%arg0: i32) -> (i32, i32) {
    %c0_i32 = arith.constant 0 : i32
    %c0_i32_0 = arith.constant 0 : i32
    return %arg0, %c0_i32 : i32, i32
  }
}

</mosaic_0001>

<llo_original>
// kernel: bert_adapted_self_output.1
$region0: #{bert_adapted_self_output.1}
  #allocation0 [shape = 'u32[]', space=smem, size = 0x4, offset = 0x4, fixed_abs, tag = 'smem constant byte address 0x4 - core index']
  #allocation1 [shape = 'u32[144,128]{1,0:T(1,128)}', space=vmem, size = 0x12000, scoped, tag = 'internal scratch']
  %s0 = inlined_call_operand.vmem [shape: bf16[16,32], index: 0, kind: input, shape index: {}]
  %s1 = inlined_call_operand.vmem [shape: f32[16,32], index: 1, kind: input, shape index: {}]
  %s2 = inlined_call_operand.vmem [shape: bf16[32,32], index: 2, kind: input, shape index: {}]
  %s3 = inlined_call_operand.vmem [shape: f32[1,32], index: 3, kind: input, shape index: {}]
  %s4 = inlined_call_operand.vmem [shape: bf16[32,128], index: 4, kind: input, shape index: {}]
  %s5 = inlined_call_operand.vmem [shape: f32[1,128], index: 5, kind: input, shape index: {}]
  %s6 = inlined_call_operand.vmem [shape: bf16[128,32], index: 6, kind: input, shape index: {}]
  %s7 = inlined_call_operand.vmem [shape: f32[1,32], index: 7, kind: input, shape index: {}]
  %s8 = inlined_call_operand.vmem [shape: f32[1,32], index: 8, kind: input, shape index: {}]
  %s9 = inlined_call_operand.vmem [shape: f32[1,32], index: 9, kind: input, shape index: {}]
  %s10 = inlined_call_operand.hbm [shape: f32[16,32], index: 10, kind: output, shape index: {}]
  %s11 = sld [smem:[#allocation0]]
  $region73: #{bert_adapted_self_output.1} parent=0
    _
  %s13 = ssub.s32 1, %s11
  %s14 = scalar_select 0, %s13, %s11
  $region1: #{bert_adapted_self_output.1} parent=0
    #allocation2 [shape = 'u8[8192]{0}', space=vmem, size = 0x2000, scoped, tag = 'output window, operand 0']
    #allocation3 [shape = 's32[2]{0}', space=sflag, size = 0x8, scoped, tag = 'scoped memory for bert_adapted_self_output.1']
    %15 = vsyncpa [#allocation3], 0
    %s16 = scalar_lea.sflag [#allocation3], 1
    %17 = vsyncpa %s16, 0
    loop: start=0, step=1, limit=4
    $region2: #{bert_adapted_self_output.1} parent=1 // loop_pre_header
      _
    $region3: #{bert_adapted_self_output.1} parent=1 // loop_header
      %s19 = sphi 0, %s23
      %p20 = scmp.ge.s32.totalorder %s19, 4
      %s29 = sphi 0, %s31
      %s32 = sphi 0, %s29
      %s33 = sphi 0, %s32
      %s49 = sphi 0, %s33
      %s55 = sphi 0, %s57
      %s58 = sphi 0, %s55
      %s59 = sphi 0, %s58
      %s75 = sphi 0, %s59
      %s79 = sphi 0, %s79
      %s81 = sphi 0, %s79
      %s82 = sphi 0, %s81
      %s96 = sphi 0, %s82
      %s100 = sphi 0, %s100
      %s102 = sphi 0, %s100
      %s103 = sphi 0, %s102
      %s117 = sphi 0, %s103
      %s121 = sphi 0, %s121
      %s123 = sphi 0, %s121
      %s124 = sphi 0, %s123
      %s138 = sphi 0, %s124
      %s142 = sphi 0, %s142
      %s144 = sphi 0, %s142
      %s145 = sphi 0, %s144
      %s159 = sphi 0, %s145
      %s163 = sphi 0, %s163
      %s165 = sphi 0, %s163
      %s166 = sphi 0, %s165
      %s180 = sphi 0, %s166
      %s184 = sphi 0, %s184
      %s186 = sphi 0, %s184
      %s187 = sphi 0, %s186
      %s201 = sphi 0, %s187
      %s205 = sphi 0, %s205
      %s207 = sphi 0, %s205
      %s208 = sphi 0, %s207
      %s222 = sphi 0, %s208
      %s226 = sphi 0, %s226
      %s228 = sphi 0, %s226
      %s229 = sphi 0, %s228
      %s243 = sphi 0, %s229
      %s249 = sphi 0, %s251
      %s252 = sphi 0, %s249
      %s253 = sphi 0, %s252
      %s269 = sphi 0, %s253
    $region4: #{bert_adapted_self_output.1} parent=1 // loop_header_branch
      %22 = sbr.rel (%p20) target = $region8
    $region5: #{bert_adapted_self_output.1} parent=1 // loop_body
      %s24 = ssub.s32 %s19, 1
      %s25 = ssub.s32 %s19, 2
      %s26 = sadd.s32 %s19, 1
      %s27 = ssub.s32 %s19, %s26
      %p28 = scmp.eq.s32.totalorder %s27, 0
      %s30 = sadd.s32 %s29, 1
      %s31 = scalar_select %p28, %s29, %s30
      %p34 = pneg %p28
      %p35 = scmp.eq.s32.totalorder %s19, 1
      %p36 = por %p34, %p35
      %p37 = scmp.ne.s32.totalorder %s29, %s32
      %p38 = scmp.eq.s32.totalorder %s19, 0
      %p39 = por %p37, %p38
      %p40 = scmp.ne.s32.totalorder %s29, %s32
      %p41 = scmp.eq.s32.totalorder %s24, 1
      %p42 = por %p40, %p41
      %p43 = scmp.ne.s32.totalorder %s32, %s33
      %p44 = scmp.eq.s32.totalorder %s24, 0
      %p45 = por %p43, %p44
      %p46 = scmp.ne.s32.totalorder %s32, %s33
      %p47 = scmp.eq.s32.totalorder %s25, 1
      %p48 = por %p46, %p47
      %p50 = scmp.ne.s32.totalorder %s33, %s49
      %p51 = scmp.eq.s32.totalorder %s25, 0
      %p52 = por %p50, %p51
      %s53 = ssub.s32 %s19, %s26
      %p54 = scmp.eq.s32.totalorder %s53, 0
      %s56 = sadd.s32 %s55, 1
      %s57 = scalar_select %p54, %s55, %s56
      %p60 = pneg %p54
      %p61 = scmp.eq.s32.totalorder %s19, 1
      %p62 = por %p60, %p61
      %p63 = scmp.ne.s32.totalorder %s55, %s58
      %p64 = scmp.eq.s32.totalorder %s19, 0
      %p65 = por %p63, %p64
      %p66 = scmp.ne.s32.totalorder %s55, %s58
      %p67 = scmp.eq.s32.totalorder %s24, 1
      %p68 = por %p66, %p67
      %p69 = scmp.ne.s32.totalorder %s58, %s59
      %p70 = scmp.eq.s32.totalorder %s24, 0
      %p71 = por %p69, %p70
      %p72 = scmp.ne.s32.totalorder %s58, %s59
      %p73 = scmp.eq.s32.totalorder %s25, 1
      %p74 = por %p72, %p73
      %p76 = scmp.ne.s32.totalorder %s59, %s75
      %p77 = scmp.eq.s32.totalorder %s25, 0
      %p78 = por %p76, %p77
      %s80 = sadd.s32 %s79, 1
      %p83 = scmp.eq.s32.totalorder %s19, 1
      %p84 = scmp.ne.s32.totalorder %s79, %s81
      %p85 = scmp.eq.s32.totalorder %s19, 0
      %p86 = por %p84, %p85
      %p87 = scmp.ne.s32.totalorder %s79, %s81
      %p88 = scmp.eq.s32.totalorder %s24, 1
      %p89 = por %p87, %p88
      %p90 = scmp.ne.s32.totalorder %s81, %s82
      %p91 = scmp.eq.s32.totalorder %s24, 0
      %p92 = por %p90, %p91
      %p93 = scmp.ne.s32.totalorder %s81, %s82
      %p94 = scmp.eq.s32.totalorder %s25, 1
      %p95 = por %p93, %p94
      %p97 = scmp.ne.s32.totalorder %s82, %s96
      %p98 = scmp.eq.s32.totalorder %s25, 0
      %p99 = por %p97, %p98
      %s101 = sadd.s32 %s100, 1
      %p104 = scmp.eq.s32.totalorder %s19, 1
      %p105 = scmp.ne.s32.totalorder %s100, %s102
      %p106 = scmp.eq.s32.totalorder %s19, 0
      %p107 = por %p105, %p106
      %p108 = scmp.ne.s32.totalorder %s100, %s102
      %p109 = scmp.eq.s32.totalorder %s24, 1
      %p110 = por %p108, %p109
      %p111 = scmp.ne.s32.totalorder %s102, %s103
      %p112 = scmp.eq.s32.totalorder %s24, 0
      %p113 = por %p111, %p112
      %p114 = scmp.ne.s32.totalorder %s102, %s103
      %p115 = scmp.eq.s32.totalorder %s25, 1
      %p116 = por %p114, %p115
      %p118 = scmp.ne.s32.totalorder %s103, %s117
      %p119 = scmp.eq.s32.totalorder %s25, 0
      %p120 = por %p118, %p119
      %s122 = sadd.s32 %s121, 1
      %p125 = scmp.eq.s32.totalorder %s19, 1
      %p126 = scmp.ne.s32.totalorder %s121, %s123
      %p127 = scmp.eq.s32.totalorder %s19, 0
      %p128 = por %p126, %p127
      %p129 = scmp.ne.s32.totalorder %s121, %s123
      %p130 = scmp.eq.s32.totalorder %s24, 1
      %p131 = por %p129, %p130
      %p132 = scmp.ne.s32.totalorder %s123, %s124
      %p133 = scmp.eq.s32.totalorder %s24, 0
      %p134 = por %p132, %p133
      %p135 = scmp.ne.s32.totalorder %s123, %s124
      %p136 = scmp.eq.s32.totalorder %s25, 1
      %p137 = por %p135, %p136
      %p139 = scmp.ne.s32.totalorder %s124, %s138
      %p140 = scmp.eq.s32.totalorder %s25, 0
      %p141 = por %p139, %p140
      %s143 = sadd.s32 %s142, 1
      %p146 = scmp.eq.s32.totalorder %s19, 1
      %p147 = scmp.ne.s32.totalorder %s142, %s144
      %p148 = scmp.eq.s32.totalorder %s19, 0
      %p149 = por %p147, %p148
      %p150 = scmp.ne.s32.totalorder %s142, %s144
      %p151 = scmp.eq.s32.totalorder %s24, 1
      %p152 = por %p150, %p151
      %p153 = scmp.ne.s32.totalorder %s144, %s145
      %p154 = scmp.eq.s32.totalorder %s24, 0
      %p155 = por %p153, %p154
      %p156 = scmp.ne.s32.totalorder %s144, %s145
      %p157 = scmp.eq.s32.totalorder %s25, 1
      %p158 = por %p156, %p157
      %p160 = scmp.ne.s32.totalorder %s145, %s159
      %p161 = scmp.eq.s32.totalorder %s25, 0
      %p162 = por %p160, %p161
      %s164 = sadd.s32 %s163, 1
      %p167 = scmp.eq.s32.totalorder %s19, 1
      %p168 = scmp.ne.s32.totalorder %s163, %s165
      %p169 = scmp.eq.s32.totalorder %s19, 0
      %p170 = por %p168, %p169
      %p171 = scmp.ne.s32.totalorder %s163, %s165
      %p172 = scmp.eq.s32.totalorder %s24, 1
      %p173 = por %p171, %p172
      %p174 = scmp.ne.s32.totalorder %s165, %s166
      %p175 = scmp.eq.s32.totalorder %s24, 0
      %p176 = por %p174, %p175
      %p177 = scmp.ne.s32.totalorder %s165, %s166
      %p178 = scmp.eq.s32.totalorder %s25, 1
      %p179 = por %p177, %p178
      %p181 = scmp.ne.s32.totalorder %s166, %s180
      %p182 = scmp.eq.s32.totalorder %s25, 0
      %p183 = por %p181, %p182
      %s185 = sadd.s32 %s184, 1
      %p188 = scmp.eq.s32.totalorder %s19, 1
      %p189 = scmp.ne.s32.totalorder %s184, %s186
      %p190 = scmp.eq.s32.totalorder %s19, 0
      %p191 = por %p189, %p190
      %p192 = scmp.ne.s32.totalorder %s184, %s186
      %p193 = scmp.eq.s32.totalorder %s24, 1
      %p194 = por %p192, %p193
      %p195 = scmp.ne.s32.totalorder %s186, %s187
      %p196 = scmp.eq.s32.totalorder %s24, 0
      %p197 = por %p195, %p196
      %p198 = scmp.ne.s32.totalorder %s186, %s187
      %p199 = scmp.eq.s32.totalorder %s25, 1
      %p200 = por %p198, %p199
      %p202 = scmp.ne.s32.totalorder %s187, %s201
      %p203 = scmp.eq.s32.totalorder %s25, 0
      %p204 = por %p202, %p203
      %s206 = sadd.s32 %s205, 1
      %p209 = scmp.eq.s32.totalorder %s19, 1
      %p210 = scmp.ne.s32.totalorder %s205, %s207
      %p211 = scmp.eq.s32.totalorder %s19, 0
      %p212 = por %p210, %p211
      %p213 = scmp.ne.s32.totalorder %s205, %s207
      %p214 = scmp.eq.s32.totalorder %s24, 1
      %p215 = por %p213, %p214
      %p216 = scmp.ne.s32.totalorder %s207, %s208
      %p217 = scmp.eq.s32.totalorder %s24, 0
      %p218 = por %p216, %p217
      %p219 = scmp.ne.s32.totalorder %s207, %s208
      %p220 = scmp.eq.s32.totalorder %s25, 1
      %p221 = por %p219, %p220
      %p223 = scmp.ne.s32.totalorder %s208, %s222
      %p224 = scmp.eq.s32.totalorder %s25, 0
      %p225 = por %p223, %p224
      %s227 = sadd.s32 %s226, 1
      %p230 = scmp.eq.s32.totalorder %s19, 1
      %p231 = scmp.ne.s32.totalorder %s226, %s228
      %p232 = scmp.eq.s32.totalorder %s19, 0
      %p233 = por %p231, %p232
      %p234 = scmp.ne.s32.totalorder %s226, %s228
      %p235 = scmp.eq.s32.totalorder %s24, 1
      %p236 = por %p234, %p235
      %p237 = scmp.ne.s32.totalorder %s228, %s229
      %p238 = scmp.eq.s32.totalorder %s24, 0
      %p239 = por %p237, %p238
      %p240 = scmp.ne.s32.totalorder %s228, %s229
      %p241 = scmp.eq.s32.totalorder %s25, 1
      %p242 = por %p240, %p241
      %p244 = scmp.ne.s32.totalorder %s229, %s243
      %p245 = scmp.eq.s32.totalorder %s25, 0
      %p246 = por %p244, %p245
      %s247 = ssub.s32 %s19, %s26
      %p248 = scmp.eq.s32.totalorder %s247, 0
      %s250 = sadd.s32 %s249, 1
      %s251 = scalar_select %p248, %s249, %s250
      %p254 = pneg %p248
      %p255 = scmp.eq.s32.totalorder %s19, 1
      %p256 = por %p254, %p255
      %p257 = scmp.ne.s32.totalorder %s249, %s252
      %p258 = scmp.eq.s32.totalorder %s19, 0
      %p259 = por %p257, %p258
      %p260 = scmp.ne.s32.totalorder %s249, %s252
      %p261 = scmp.eq.s32.totalorder %s24, 1
      %p262 = por %p260, %p261
      %p263 = scmp.ne.s32.totalorder %s252, %s253
      %p264 = scmp.eq.s32.totalorder %s24, 0
      %p265 = por %p263, %p264
      %p266 = scmp.ne.s32.totalorder %s252, %s253
      %p267 = scmp.eq.s32.totalorder %s25, 1
      %p268 = por %p266, %p267
      %p270 = scmp.ne.s32.totalorder %s253, %s269
      %p271 = scmp.eq.s32.totalorder %s25, 0
      %p272 = por %p270, %p271
      %p273 = scmp.le.s32.totalorder 1, %s19
      %p274 = scmp.lt.s32.totalorder %s19, 3
      %p275 = pnand %p273, %p274
      %p276 = pneg %p275
      // Predicated region
      $region9: #{bert_adapted_self_output.1} parent=5 // pred_check
        _
      $region10: #{bert_adapted_self_output.1} parent=5 // pred_check_branch
        %278 = sbr.rel (%p275) target = $region12
      $region11: #{bert_adapted_self_output.1} parent=5 // pred_region
        %s279 = ssub.s32 %s19, 1
        // Predicated region
        $region13: #{bert_adapted_self_output.1} parent=11 // pred_check
          %p280 = pneg %p92
        $region14: #{bert_adapted_self_output.1} parent=11 // pred_check_branch
          %282 = sbr.rel (%p280) target = $region16
        $region15: #{bert_adapted_self_output.1} parent=11 // pred_region
          _
        $region16: #{bert_adapted_self_output.1} parent=11 // pred_fallthru
          _
        // Predicated region
        $region17: #{bert_adapted_self_output.1} parent=11 // pred_check
          %p283 = pneg %p113
        $region18: #{bert_adapted_self_output.1} parent=11 // pred_check_branch
          %285 = sbr.rel (%p283) target = $region20
        $region19: #{bert_adapted_self_output.1} parent=11 // pred_region
          _
        $region20: #{bert_adapted_self_output.1} parent=11 // pred_fallthru
          _
        // Predicated region
        $region21: #{bert_adapted_self_output.1} parent=11 // pred_check
          %p286 = pneg %p134
        $region22: #{bert_adapted_self_output.1} parent=11 // pred_check_branch
          %288 = sbr.rel (%p286) target = $region24
        $region23: #{bert_adapted_self_output.1} parent=11 // pred_region
          _
        $region24: #{bert_adapted_self_output.1} parent=11 // pred_fallthru
          _
        // Predicated region
        $region25: #{bert_adapted_self_output.1} parent=11 // pred_check
          %p289 = pneg %p155
        $region26: #{bert_adapted_self_output.1} parent=11 // pred_check_branch
          %291 = sbr.rel (%p289) target = $region28
        $region27: #{bert_adapted_self_output.1} parent=11 // pred_region
          _
        $region28: #{bert_adapted_self_output.1} parent=11 // pred_fallthru
          _
        // Predicated region
        $region29: #{bert_adapted_self_output.1} parent=11 // pred_check
          %p292 = pneg %p176
        $region30: #{bert_adapted_self_output.1} parent=11 // pred_check_branch
          %294 = sbr.rel (%p292) target = $region32
        $region31: #{bert_adapted_self_output.1} parent=11 // pred_region
          _
        $region32: #{bert_adapted_self_output.1} parent=11 // pred_fallthru
          _
        // Predicated region
        $region33: #{bert_adapted_self_output.1} parent=11 // pred_check
          %p295 = pneg %p197
        $region34: #{bert_adapted_self_output.1} parent=11 // pred_check_branch
          %297 = sbr.rel (%p295) target = $region36
        $region35: #{bert_adapted_self_output.1} parent=11 // pred_region
          _
        $region36: #{bert_adapted_self_output.1} parent=11 // pred_fallthru
          _
        // Predicated region
        $region37: #{bert_adapted_self_output.1} parent=11 // pred_check
          %p298 = pneg %p218
        $region38: #{bert_adapted_self_output.1} parent=11 // pred_check_branch
          %300 = sbr.rel (%p298) target = $region40
        $region39: #{bert_adapted_self_output.1} parent=11 // pred_region
          _
        $region40: #{bert_adapted_self_output.1} parent=11 // pred_fallthru
          _
        // Predicated region
        $region41: #{bert_adapted_self_output.1} parent=11 // pred_check
          %p301 = pneg %p239
        $region42: #{bert_adapted_self_output.1} parent=11 // pred_check_branch
          %303 = sbr.rel (%p301) target = $region44
        $region43: #{bert_adapted_self_output.1} parent=11 // pred_region
          _
        $region44: #{bert_adapted_self_output.1} parent=11 // pred_fallthru
          _
      $region12: #{bert_adapted_self_output.1} parent=5 // pred_fallthru
        _
      %p304 = scmp.lt.s32.totalorder %s19, 2
      // Predicated region
      $region45: #{bert_adapted_self_output.1} parent=5 // pred_check
        %p305 = pneg %p304
      $region46: #{bert_adapted_self_output.1} parent=5 // pred_check_branch
        %307 = sbr.rel (%p305) target = $region48
      $region47: #{bert_adapted_self_output.1} parent=5 // pred_region
        // Predicated region
        $region49: #{bert_adapted_self_output.1} parent=47 // pred_check
          %p308 = pneg %p39
        $region50: #{bert_adapted_self_output.1} parent=47 // pred_check_branch
          %310 = sbr.rel (%p308) target = $region52
        $region51: #{bert_adapted_self_output.1} parent=47 // pred_region
          %p311 = scmp.lt.s32.totalorder %s19, 1
          %s312 = scalar_select %p311, %s19, 1
          %s313 = smul.addr %s312, 4
          %s314 = scalar_lea.vmem %s0, %s313
        $region52: #{bert_adapted_self_output.1} parent=47 // pred_fallthru
          _
        // Predicated region
        $region53: #{bert_adapted_self_output.1} parent=47 // pred_check
          %p315 = pneg %p65
        $region54: #{bert_adapted_self_output.1} parent=47 // pred_check_branch
          %317 = sbr.rel (%p315) target = $region56
        $region55: #{bert_adapted_self_output.1} parent=47 // pred_region
          %p318 = scmp.lt.s32.totalorder %s19, 1
          %s319 = scalar_select %p318, %s19, 1
          %s320 = smul.addr %s319, 8
          %s321 = scalar_lea.vmem %s1, %s320
        $region56: #{bert_adapted_self_output.1} parent=47 // pred_fallthru
          _
      $region48: #{bert_adapted_self_output.1} parent=5 // pred_fallthru
        _
      %p322 = scmp.le.s32.totalorder 1, %s19
      %p323 = scmp.lt.s32.totalorder %s19, 3
      %p324 = pnand %p322, %p323
      %p325 = pneg %p324
      // Predicated region
      $region57: #{bert_adapted_self_output.1} parent=5 // pred_check
        _
      $region58: #{bert_adapted_self_output.1} parent=5 // pred_check_branch
        %327 = sbr.rel (%p324) target = $region60
      $region59: #{bert_adapted_self_output.1} parent=5 // pred_region
        %s328 = ssub.s32 %s19, 1
        %p329 = scmp.lt.s32.totalorder %s24, 1
        %s330 = scalar_select %p329, %s24, 1
        %s331 = smul.addr %s330, 4
        %s332 = scalar_lea.vmem %s0, %s331
        %p333 = pneg %p45
        %p334 = pneg %p42
        %p335 = scmp.lt.s32.totalorder %s24, 1
        %s336 = scalar_select %p335, %s24, 1
        %s337 = smul.addr %s336, 8
        %s338 = scalar_lea.vmem %s1, %s337
        %p339 = pneg %p71
        %p340 = pneg %p68
        %p341 = pneg %p92
        %p342 = pneg %p89
        %p343 = pneg %p113
        %p344 = pneg %p110
        %p345 = pneg %p134
        %p346 = pneg %p131
        %p347 = pneg %p155
        %p348 = pneg %p152
        %p349 = pneg %p176
        %p350 = pneg %p173
        %p351 = pneg %p197
        %p352 = pneg %p194
        %p353 = pneg %p218
        %p354 = pneg %p215
        %p355 = pneg %p239
        %p356 = pneg %p236
        %p357 = pneg %p265
        %p358 = pneg %p262
        %s359 = sand.u32 %s252, 1
        %s360 = scalar_lea.sflag [#allocation3], %s359
        %s361 = sand.u32 %s252, 1
        %s362 = smul.addr %s361, 8
        %s363 = scalar_lea.vmem [#allocation2], %s362
        %p364 = scmp.lt.s32.totalorder %s24, 1
        %s365 = scalar_select %p364, %s24, 1
        %s366 = smul.addr %s365, 4
        %s367 = scalar_lea.vmem %s0, %s366
        %p368 = scmp.lt.s32.totalorder %s24, 1
        %s369 = scalar_select %p368, %s24, 1
        %s370 = smul.addr %s369, 8
        %s371 = scalar_lea.vmem %s1, %s370
        %v373 = vld [vmem:[%s367] sm:$0xf]
        %v374 = vld [vmem:[%s2] sm:$0xf]
        %v375 = vld [vmem:[%s2 + $0x4] sm:$0xf]
        %v376 = vld [vmem:[%s2 + $0x8] sm:$0xf]
        %v377 = vld [vmem:[%s2 + $0xc] sm:$0xf]
        %v378 = vld [vmem:[%s3] sm:$0x1]
        %v380 = vlaneseq
        %v381 = vshrl.u32 %v380, 7
        %v382 = vsub.s32 0, %v381
        %v383 = vrot.slane %v378, %v382
        %v389 = vunpack.c.l.b16 %v374
        %v390 = vunpack.c.l.b16 %v375
        %v391 = vunpack.c.l.b16 %v376
        %v392 = vunpack.c.l.b16 %v377
        %v393 = vpack.c.b16 %v390, %v389
        %v394 = vpack.c.b16 %v392, %v391
        %vm397 = vcmask 261120
        %v399 = vsel %vm397, %v373, 0
        %401 = vmatprep.subr.bf16.mxu0 0
        %402 = vmatpush1.bf16.msra.mxu0 %v393
        %403 = vmatprep.subr.bf16.mxu0 0
        %404 = vmatpush1.bf16.msra.mxu0 %v394
        %405 = vmatprep.subr.bf16.mxu0 0
        %406 = vmatpush1.bf16.msra.mxu0 0
        %407 = vmatprep.subr.bf16.mxu0 0
        %408 = vmatpush1.bf16.msra.mxu0 0
        %409 = vmatprep.subr.bf16.mxu0 0
        %410 = vmatpush1.bf16.msra.mxu0 0
        %411 = vmatprep.subr.bf16.mxu0 0
        %412 = vmatpush1.bf16.msra.mxu0 0
        %413 = vmatprep.subr.bf16.mxu0 0
        %414 = vmatpush1.bf16.msra.mxu0 0
        %415 = vmatprep.subr.bf16.mxu0 0
        %416 = vmatpush1.bf16.msra.mxu0 0
        %417 = vmatprep.subr.bf16.mxu0 0
        %418 = vmatpush1.bf16.msra.mxu0 0
        %419 = vmatprep.subr.bf16.mxu0 0
        %420 = vmatpush1.bf16.msra.mxu0 0
        %421 = vmatprep.subr.bf16.mxu0 0
        %422 = vmatpush1.bf16.msra.mxu0 0
        %423 = vmatprep.subr.bf16.mxu0 0
        %424 = vmatpush1.bf16.msra.mxu0 0
        %425 = vmatprep.subr.bf16.mxu0 0
        %426 = vmatpush1.bf16.msra.mxu0 0
        %427 = vmatprep.subr.bf16.mxu0 0
        %428 = vmatpush1.bf16.msra.mxu0 0
        %429 = vmatprep.subr.bf16.mxu0 0
        %430 = vmatpush1.bf16.msra.mxu0 0
        %431 = vmatprep.subr.bf16.mxu0 0
        %432 = vmatpush1.bf16.msra.mxu0 0
        %433 = vmatprep.mubr.bf16.mxu0 0
        %434 = vmatmul.mubr.bf16.gmra.mrb[0].mxu0 %v399
        %v435 = vpop.f32.mrb[0].mxu0
        %v436 = vadd.f32 %v383, %v435
        %v437 = vpop.f32.mrb[0].mxu0
        %v438 = vpop.f32.mrb[0].mxu0
        %v439 = vpop.f32.mrb[0].mxu0
        %440 = vdwg.mxu0
        %v441 = vpack.c.bf16 %v436, %v436
        %v442 = vld [vmem:[%s4] sm:$0xf]
        %v443 = vld [vmem:[%s4 + $0x4] sm:$0xf]
        %v444 = vld [vmem:[%s4 + $0x8] sm:$0xf]
        %v445 = vld [vmem:[%s4 + $0xc] sm:$0xf]
        %v446 = vld [vmem:[%s5] sm:$0x1]
        %v448 = vlaneseq
        %v449 = vshrl.u32 %v448, 7
        %v450 = vsub.s32 0, %v449
        %v451 = vrot.slane %v446, %v450
        %v457 = vunpack.c.l.b16 %v442
        %v458 = vunpack.c.l.b16 %v443
        %v459 = vunpack.c.l.b16 %v444
        %v460 = vunpack.c.l.b16 %v445
        %v461 = vpack.c.b16 %v458, %v457
        %v462 = vpack.c.b16 %v460, %v459
        %v466 = vsel %vm397, %v441, 0
        %468 = vmatprep.subr.bf16.mxu0 0
        %469 = vmatpush1.bf16.msra.mxu0 %v461
        %470 = vmatprep.subr.bf16.mxu0 0
        %471 = vmatpush1.bf16.msra.mxu0 %v462
        %472 = vmatprep.subr.bf16.mxu0 0
        %473 = vmatpush1.bf16.msra.mxu0 0
        %474 = vmatprep.subr.bf16.mxu0 0
        %475 = vmatpush1.bf16.msra.mxu0 0
        %476 = vmatprep.subr.bf16.mxu0 0
        %477 = vmatpush1.bf16.msra.mxu0 0
        %478 = vmatprep.subr.bf16.mxu0 0
        %479 = vmatpush1.bf16.msra.mxu0 0
        %480 = vmatprep.subr.bf16.mxu0 0
        %481 = vmatpush1.bf16.msra.mxu0 0
        %482 = vmatprep.subr.bf16.mxu0 0
        %483 = vmatpush1.bf16.msra.mxu0 0
        %484 = vmatprep.subr.bf16.mxu0 0
        %485 = vmatpush1.bf16.msra.mxu0 0
        %486 = vmatprep.subr.bf16.mxu0 0
        %487 = vmatpush1.bf16.msra.mxu0 0
        %488 = vmatprep.subr.bf16.mxu0 0
        %489 = vmatpush1.bf16.msra.mxu0 0
        %490 = vmatprep.subr.bf16.mxu0 0
        %491 = vmatpush1.bf16.msra.mxu0 0
        %492 = vmatprep.subr.bf16.mxu0 0
        %493 = vmatpush1.bf16.msra.mxu0 0
        %494 = vmatprep.subr.bf16.mxu0 0
        %495 = vmatpush1.bf16.msra.mxu0 0
        %496 = vmatprep.subr.bf16.mxu0 0
        %497 = vmatpush1.bf16.msra.mxu0 0
        %498 = vmatprep.subr.bf16.mxu0 0
        %499 = vmatpush1.bf16.msra.mxu0 0
        %500 = vmatprep.mubr.bf16.mxu0 0
        %501 = vmatmul.mubr.bf16.gmra.mrb[0].mxu0 %v466
        %v502 = vpop.f32.mrb[0].mxu0
        %v503 = vadd.f32 %v451, %v502
        %v504 = vpop.f32.mrb[0].mxu0
        %v505 = vpop.f32.mrb[0].mxu0
        %v506 = vpop.f32.mrb[0].mxu0
        %507 = vdwg.mxu0
        %v508 = vmax.f32 %v503, 0.0
        %v509 = vpack.c.bf16 %v508, %v508
        %v510 = vld [vmem:[%s6] sm:$0xf]
        %v511 = vld [vmem:[%s6 + $0x4] sm:$0xf]
        %v512 = vld [vmem:[%s6 + $0x8] sm:$0xf]
        %v513 = vld [vmem:[%s6 + $0xc] sm:$0xf]
        %v514 = vld [vmem:[%s6 + $0x10] sm:$0xf]
        %v515 = vld [vmem:[%s6 + $0x14] sm:$0xf]
        %v516 = vld [vmem:[%s6 + $0x18] sm:$0xf]
        %v517 = vld [vmem:[%s6 + $0x1c] sm:$0xf]
        %v518 = vld [vmem:[%s6 + $0x20] sm:$0xf]
        %v519 = vld [vmem:[%s6 + $0x24] sm:$0xf]
        %v520 = vld [vmem:[%s6 + $0x28] sm:$0xf]
        %v521 = vld [vmem:[%s6 + $0x2c] sm:$0xf]
        %v522 = vld [vmem:[%s6 + $0x30] sm:$0xf]
        %v523 = vld [vmem:[%s6 + $0x34] sm:$0xf]
        %v524 = vld [vmem:[%s6 + $0x38] sm:$0xf]
        %v525 = vld [vmem:[%s6 + $0x3c] sm:$0xf]
        %v526 = vld [vmem:[%s7] sm:$0x1]
        %v528 = vlaneseq
        %v529 = vshrl.u32 %v528, 7
        %v530 = vsub.s32 0, %v529
        %v531 = vrot.slane %v526, %v530
        %v549 = vunpack.c.l.b16 %v510
        %v550 = vunpack.c.l.b16 %v511
        %v551 = vunpack.c.l.b16 %v512
        %v552 = vunpack.c.l.b16 %v513
        %v553 = vunpack.c.l.b16 %v514
        %v554 = vunpack.c.l.b16 %v515
        %v555 = vunpack.c.l.b16 %v516
        %v556 = vunpack.c.l.b16 %v517
        %v557 = vunpack.c.l.b16 %v518
        %v558 = vunpack.c.l.b16 %v519
        %v559 = vunpack.c.l.b16 %v520
        %v560 = vunpack.c.l.b16 %v521
        %v561 = vunpack.c.l.b16 %v522
        %v562 = vunpack.c.l.b16 %v523
        %v563 = vunpack.c.l.b16 %v524
        %v564 = vunpack.c.l.b16 %v525
        %v565 = vpack.c.b16 %v550, %v549
        %v566 = vpack.c.b16 %v552, %v551
        %v567 = vpack.c.b16 %v554, %v553
        %v568 = vpack.c.b16 %v556, %v555
        %v569 = vpack.c.b16 %v558, %v557
        %v570 = vpack.c.b16 %v560, %v559
        %v571 = vpack.c.b16 %v562, %v561
        %v572 = vpack.c.b16 %v564, %v563
        %581 = vmatprep.subr.bf16.mxu0 0
        %582 = vmatpush1.bf16.msra.mxu0 %v565
        %583 = vmatprep.subr.bf16.mxu0 0
        %584 = vmatpush1.bf16.msra.mxu0 %v566
        %585 = vmatprep.subr.bf16.mxu0 0
        %586 = vmatpush1.bf16.msra.mxu0 %v567
        %587 = vmatprep.subr.bf16.mxu0 0
        %588 = vmatpush1.bf16.msra.mxu0 %v568
        %589 = vmatprep.subr.bf16.mxu0 0
        %590 = vmatpush1.bf16.msra.mxu0 %v569
        %591 = vmatprep.subr.bf16.mxu0 0
        %592 = vmatpush1.bf16.msra.mxu0 %v570
        %593 = vmatprep.subr.bf16.mxu0 0
        %594 = vmatpush1.bf16.msra.mxu0 %v571
        %595 = vmatprep.subr.bf16.mxu0 0
        %596 = vmatpush1.bf16.msra.mxu0 %v572
        %597 = vmatprep.subr.bf16.mxu0 0
        %598 = vmatpush1.bf16.msra.mxu0 0
        %599 = vmatprep.subr.bf16.mxu0 0
        %600 = vmatpush1.bf16.msra.mxu0 0
        %601 = vmatprep.subr.bf16.mxu0 0
        %602 = vmatpush1.bf16.msra.mxu0 0
        %603 = vmatprep.subr.bf16.mxu0 0
        %604 = vmatpush1.bf16.msra.mxu0 0
        %605 = vmatprep.subr.bf16.mxu0 0
        %606 = vmatpush1.bf16.msra.mxu0 0
        %607 = vmatprep.subr.bf16.mxu0 0
        %608 = vmatpush1.bf16.msra.mxu0 0
        %609 = vmatprep.subr.bf16.mxu0 0
        %610 = vmatpush1.bf16.msra.mxu0 0
        %611 = vmatprep.subr.bf16.mxu0 0
        %612 = vmatpush1.bf16.msra.mxu0 0
        %613 = vmatprep.mubr.bf16.mxu0 0
        %614 = vmatmul.mubr.bf16.gmra.mrb[0].mxu0 %v509
        %v615 = vpop.f32.mrb[0].mxu0
        %v616 = vadd.f32 %v531, %v615
        %v617 = vpop.f32.mrb[0].mxu0
        %v618 = vpop.f32.mrb[0].mxu0
        %v619 = vpop.f32.mrb[0].mxu0
        %620 = vdwg.mxu0
        %v621 = vadd.f32 %v436, %v616
        %v622 = vld [vmem:[%s371] sm:$0xff]
        %v623 = vadd.f32 %v621, %v622
        %v624 = vsel %vm397, %v623, 0.0
        %625 = vadd.xlane.f32.xlu0 %v624
        %v626 = vpop.xlane.xlu0 %625
        %v627 = vmul.f32 %v623, %v623
        %v628 = vsel %vm397, %v627, 0.0
        %629 = vadd.xlane.f32.xlu0 %v628
        %v630 = vpop.xlane.xlu0 %629
        %v631 = vmul.f32 %v626, 0.03125
        %v632 = vmul.f32 %v630, 0.03125
        %v633 = vmul.f32 %v631, %v631
        %v634 = vsub.f32 %v632, %v633
        %v635 = vmax.f32 %v634, 0.0
        %v636 = vsub.f32 %v623, %v631
        %v637 = vadd.f32 %v635, 1e-12
        %v638 = vrsqrt.pop %v637
        %v639 = vmul.f32 %v636, %v638
        %v640 = vld [vmem:[%s8] sm:$0x1]
        %v642 = vlaneseq
        %v643 = vshrl.u32 %v642, 7
        %v644 = vsub.s32 0, %v643
        %v645 = vrot.slane %v640, %v644
        %v647 = vmul.f32 %v639, %v645
        %v648 = vld [vmem:[%s9] sm:$0x1]
        %v650 = vlaneseq
        %v651 = vshrl.u32 %v650, 7
        %v652 = vsub.s32 0, %v651
        %v653 = vrot.slane %v648, %v652
        %v655 = vadd.f32 %v647, %v653
        %656 = vst.msk [vmem:[%s363] sm:$0xff] %vm397, %v655
        %s657 = sand.u32 %s252, 1
        %s658 = scalar_lea.sflag [#allocation3], %s657
        %s659 = sand.u32 %s252, 1
        %s660 = smul.addr %s659, 8
        %s661 = scalar_lea.vmem [#allocation2], %s660
        // Predicated region
        $region61: #{bert_adapted_self_output.1} parent=59 // pred_check
          %p662 = pneg %p262
        $region62: #{bert_adapted_self_output.1} parent=59 // pred_check_branch
          %664 = sbr.rel (%p662) target = $region64
        $region63: #{bert_adapted_self_output.1} parent=59 // pred_region
          %s666 = ssub.s32 128, 128
          %667 = vsyncadd %s658, %s666
          %s668 = smul.addr %s24, 128
          %s669 = scalar_lea.hbm %s10, %s668
          %s671 = sshll.u32 %s661, 4
          %s672 = int_to_ptr.vmem [resolvable:$true] %s671
          %674 = dma.vmem_to_hbm [thread:$0]  %s672, 128, %s669, %s658
        $region64: #{bert_adapted_self_output.1} parent=59 // pred_fallthru
          _
      $region60: #{bert_adapted_self_output.1} parent=5 // pred_fallthru
        _
      %p675 = scmp.le.s32.totalorder 2, %s19
      // Predicated region
      $region65: #{bert_adapted_self_output.1} parent=5 // pred_check
        %p676 = pneg %p675
      $region66: #{bert_adapted_self_output.1} parent=5 // pred_check_branch
        %678 = sbr.rel (%p676) target = $region68
      $region67: #{bert_adapted_self_output.1} parent=5 // pred_region
        %s679 = ssub.s32 %s19, 2
        // Predicated region
        $region69: #{bert_adapted_self_output.1} parent=67 // pred_check
          %p680 = pneg %p268
        $region70: #{bert_adapted_self_output.1} parent=67 // pred_check_branch
          %682 = sbr.rel (%p680) target = $region72
        $region71: #{bert_adapted_self_output.1} parent=67 // pred_region
          %s683 = sand.u32 %s253, 1
          %s684 = scalar_lea.sflag [#allocation3], %s683
          %s685 = sand.u32 %s253, 1
          %s686 = smul.addr %s685, 8
          %s687 = scalar_lea.vmem [#allocation2], %s686
          %688 = dma.done %s684, 128
        $region72: #{bert_adapted_self_output.1} parent=67 // pred_fallthru
          _
      $region68: #{bert_adapted_self_output.1} parent=5 // pred_fallthru
        _
    $region6: #{bert_adapted_self_output.1} parent=1 // loop_footer
      %s23 = sadd.s32 1, %s19
    $region7: #{bert_adapted_self_output.1} parent=1 // loop_footer_branch
      %18 = sbr.rel target = $region3
    $region8: #{bert_adapted_self_output.1} parent=1 // loop_exit
      _
    %689 = vsyncpa [#allocation3], 1
    %s690 = scalar_lea.sflag [#allocation3], 1
    %691 = vsyncpa %s690, 1

</llo_original>
